<compile_context>
chip_gen: v5e
topology: v5e:2x2
jax: 0.10.0
libtpu: 0.0.40
codegen_flags: <defaults>
</compile_context>

<pallas_src>
import functools

import jax
import jax.numpy as jnp
import numpy as np
from jax.experimental import pallas as pl
from jax.experimental.pallas import tpu as pltpu


def ff_kernel(x_ref, w_ref, b_ref, m_ref, o_ref, *, hw):
    # Block shapes:
    #   x_ref : (1, C1, 2*HW)   [real | imag] of subsampled F_cat, channel-major
    #   w_ref : (Cout, C1)      folded 1x1 conv weight  (W2 @ W1)
    #   b_ref : (Cout, 2*HW)    folded bias slab (real half = b12, imag half = 0)
    #   m_ref : (2*HW, 2*HW)    block-real kron(I_Ho, inverse-DFT_Wo) matrix
    #   o_ref : (1, Cout, HW)   |ifft(conv2(conv1(F)))|^2  (real)
    x = x_ref[0]                                                      # (C1, 2HW)

    # folded conv_1 + conv_2 (1x1), real + imag in one matmul; bias only hits
    # the real half via the precomputed slab.
    y = jnp.dot(w_ref[...], x, preferred_element_type=jnp.float32)    # (Cout, 2HW)
    y = y + b_ref[...]

    # complex ifft along W as one block-real matmul on the flattened lanes.
    z = jnp.dot(y, m_ref[...], preferred_element_type=jnp.float32)    # (Cout, 2HW)
    zr = z[:, :hw]
    zi = z[:, hw:]

    # z * conj(z) = |z|^2 (imaginary part is exactly zero).
    o_ref[0] = zr * zr + zi * zi


def ff_pallas(f1, f2, f3, f4, w1, b1, w2, b2):
    B, C1, H, W = f1.shape
    Cout = w2.shape[0]

    # ---- glue: fft2, concat, stride-2 subsample (no Pallas FFT primitive) ----
    F1, F2, F3, F4 = (jnp.fft.fft2(x) for x in (f1, f2, f3, f4))
    if H % 2 == 0 and W % 2 == 0:
        # subsample before concatenation (exact when H, W are even) to avoid
        # building the 4x oversized (B, C1, 2H, 2W) intermediate.
        Fs = jnp.concatenate(
            [jnp.concatenate([F1[:, :, ::2, ::2], F2[:, :, ::2, ::2]], axis=2),
             jnp.concatenate([F3[:, :, ::2, ::2], F4[:, :, ::2, ::2]], axis=2)],
            axis=3)
    else:
        Fc = jnp.concatenate(
            [jnp.concatenate([F1, F2], axis=2),
             jnp.concatenate([F3, F4], axis=2)], axis=3)
        Fs = Fc[:, :, ::2, ::2]
    _, _, Ho, Wo = Fs.shape
    HW = Ho * Wo

    # channel-major, real|imag stacked on the lane axis -> (B, C1, 2*HW)
    xr = jnp.real(Fs).astype(jnp.float32).reshape(B, C1, HW)
    xi = jnp.imag(Fs).astype(jnp.float32).reshape(B, C1, HW)
    xri = jnp.concatenate([xr, xi], axis=2)

    # fold the two 1x1 convs: W12 = W2 @ W1, b12 = W2 @ b1 + b2
    w1m = jnp.asarray(w1, jnp.float32)
    w2m = jnp.asarray(w2, jnp.float32)
    w12 = w2m @ w1m                                                    # (Cout, C1)
    b12 = w2m @ jnp.asarray(b1, jnp.float32) + jnp.asarray(b2, jnp.float32)
    bri = jnp.concatenate(
        [jnp.broadcast_to(b12[:, None], (Cout, HW)),
         jnp.zeros((Cout, HW), jnp.float32)], axis=1)                  # (Cout, 2HW)

    # Inverse-DFT along the last spatial dim (torch.fft.ifft, dim=-1) as a
    # right-multiply on the flattened (Ho*Wo) lane axis, complex -> block-real.
    k = jnp.arange(Wo, dtype=jnp.float32)
    ang = 2.0 * jnp.pi * jnp.outer(k, k) / Wo
    eye = jnp.eye(Ho, dtype=jnp.float32)
    mr = jnp.kron(eye, jnp.cos(ang) / Wo)                              # (HW, HW)
    mi = jnp.kron(eye, jnp.sin(ang) / Wo)
    mblk = jnp.block([[mr, mi], [-mi, mr]]).astype(jnp.float32)        # (2HW, 2HW)

    out = pl.pallas_call(
        functools.partial(ff_kernel, hw=HW),
        out_shape=jax.ShapeDtypeStruct((B, Cout, HW), jnp.float32),
        grid=(B,),
        in_specs=[
            pl.BlockSpec((1, C1, 2 * HW), lambda b: (b, 0, 0)),
            pl.BlockSpec((Cout, C1), lambda b: (0, 0)),
            pl.BlockSpec((Cout, 2 * HW), lambda b: (0, 0)),
            pl.BlockSpec((2 * HW, 2 * HW), lambda b: (0, 0)),
        ],
        out_specs=pl.BlockSpec((1, Cout, HW), lambda b: (b, 0, 0)),
        compiler_params=pltpu.CompilerParams(
            dimension_semantics=("parallel",)),
    )(xri, w12, bri, mblk)

    # back to NCHW, complex output (imag of x*conj(x) is exactly zero).
    return out.reshape(B, Cout, Ho, Wo).astype(jnp.complex64)


def ff_reference(f1, f2, f3, f4, w1, b1, w2, b2):
    """Pure-JAX reference with the same semantics (uses jnp.fft)."""
    F1, F2, F3, F4 = (jnp.fft.fft2(x) for x in (f1, f2, f3, f4))
    Fc = jnp.concatenate(
        [jnp.concatenate([F1, F2], axis=2),
         jnp.concatenate([F3, F4], axis=2)], axis=3)
    y1 = jnp.einsum('oc,bchw->bohw', w1, Fc) + b1[None, :, None, None]
    y2 = jnp.einsum('oc,bchw->bohw', w2, y1[:, :, ::2, ::2]) + b2[None, :, None, None]
    z = jnp.fft.ifft(y2, axis=-1)
    return z * jnp.conj(z)


if __name__ == "__main__":
    key = jax.random.PRNGKey(0)
    k1, k2, k3, k4, kw1, kb1, kw2, kb2 = jax.random.split(key, 8)

    # Shapes implied by the module: all four features share the same channel
    # count c1 == c2 == channel (required for cat + conv_2(conv_1(.)) to work).
    B, C, H, W = 2, 8, 16, 16
    f1 = jax.random.normal(k1, (B, C, H, W), jnp.float32)
    f2 = jax.random.normal(k2, (B, C, H, W), jnp.float32)
    f3 = jax.random.normal(k3, (B, C, H, W), jnp.float32)
    f4 = jax.random.normal(k4, (B, C, H, W), jnp.float32)

    # conv_1, conv_2 are 1x1 -> (Cout, Cin) matrices.
    # TODO(synk): conv_3 is defined in the PyTorch __init__ but never used in forward.
    w1 = 0.1 * jax.random.normal(kw1, (C, C), jnp.float32)
    b1 = 0.1 * jax.random.normal(kb1, (C,), jnp.float32)
    w2 = 0.1 * jax.random.normal(kw2, (C, C), jnp.float32)
    b2 = 0.1 * jax.random.normal(kb2, (C,), jnp.float32)

    out = jax.block_until_ready(ff_pallas(f1, f2, f3, f4, w1, b1, w2, b2))

    ref = ff_reference(f1, f2, f3, f4, w1, b1, w2, b2)
    np.testing.assert_allclose(np.real(np.asarray(out)), np.real(np.asarray(ref)),
                               rtol=2e-3, atol=2e-3)

    print("KERNEL_OK")
</pallas_src>

<mosaic_0001>
module attributes {stable_mosaic.version = 11 : i64} {
  func.func @ff_kernel(%arg0: i32, %arg1: memref<1x8x512xf32, #tpu.memory_space<vmem>>, %arg2: memref<8x8xf32, #tpu.memory_space<vmem>>, %arg3: memref<8x512xf32, #tpu.memory_space<vmem>>, %arg4: memref<512x512xf32, #tpu.memory_space<vmem>>, %arg5: memref<1x8x256xf32, #tpu.memory_space<vmem>>) attributes {dimension_semantics = [#tpu.dimension_semantics<parallel>], iteration_bounds = array<i64: 2>, scalar_prefetch = 0 : i64, scratch_operands = 0 : i64, tpu.core_type = #tpu.core_type<tc>, window_params = [{transform_indices = @transform_0, window_bounds = array<i64: 1, 8, 512>}, {pipeline_mode = #tpu.pipeline_mode<synchronous>, transform_indices = @transform_1, window_bounds = array<i64: 8, 8>}, {pipeline_mode = #tpu.pipeline_mode<synchronous>, transform_indices = @transform_2, window_bounds = array<i64: 8, 512>}, {pipeline_mode = #tpu.pipeline_mode<synchronous>, transform_indices = @transform_3, window_bounds = array<i64: 512, 512>}, {transform_indices = @transform_4, window_bounds = array<i64: 1, 8, 256>}]} {
    %c0 = arith.constant 0 : index
    %c0_0 = arith.constant 0 : index
    %c0_1 = arith.constant 0 : index
    %0 = vector.load %arg1[%c0, %c0_0, %c0_1] : memref<1x8x512xf32, #tpu.memory_space<vmem>>, vector<1x8x512xf32>
    %1 = vector.shape_cast %0 : vector<1x8x512xf32> to vector<8x512xf32>
    %c0_2 = arith.constant 0 : index
    %c0_3 = arith.constant 0 : index
    %2 = vector.load %arg2[%c0_2, %c0_3] : memref<8x8xf32, #tpu.memory_space<vmem>>, vector<8x8xf32>
    %cst = arith.constant dense<0.000000e+00> : vector<8x512xf32>
    %3 = tpu.matmul %2, %1, %cst {dimension_numbers = #tpu.dot_dimension_numbers<[1], [0], [0], [1], [0, 0, 1, 1], [], []>} : vector<8x8xf32>, vector<8x512xf32>, vector<8x512xf32> -> vector<8x512xf32>
    %c0_4 = arith.constant 0 : index
    %c0_5 = arith.constant 0 : index
    %4 = vector.load %arg3[%c0_4, %c0_5] : memref<8x512xf32, #tpu.memory_space<vmem>>, vector<8x512xf32>
    %5 = arith.addf %3, %4 : vector<8x512xf32>
    %c0_6 = arith.constant 0 : index
    %c0_7 = arith.constant 0 : index
    %6 = vector.load %arg4[%c0_6, %c0_7] : memref<512x512xf32, #tpu.memory_space<vmem>>, vector<512x512xf32>
    %cst_8 = arith.constant dense<0.000000e+00> : vector<8x512xf32>
    %7 = tpu.matmul %5, %6, %cst_8 {dimension_numbers = #tpu.dot_dimension_numbers<[1], [0], [0], [1], [0, 0, 1, 1], [], []>} : vector<8x512xf32>, vector<512x512xf32>, vector<8x512xf32> -> vector<8x512xf32>
    %8 = vector.extract_strided_slice %7 {offsets = [0, 0], sizes = [8, 256], strides = [1, 1]} : vector<8x512xf32> to vector<8x256xf32>
    %9 = vector.extract_strided_slice %7 {offsets = [0, 256], sizes = [8, 256], strides = [1, 1]} : vector<8x512xf32> to vector<8x256xf32>
    %10 = arith.mulf %8, %8 : vector<8x256xf32>
    %11 = arith.mulf %9, %9 : vector<8x256xf32>
    %12 = arith.addf %10, %11 : vector<8x256xf32>
    %c0_9 = arith.constant 0 : index
    %c0_10 = arith.constant 0 : index
    %c0_11 = arith.constant 0 : index
    %13 = vector.load %arg5[%c0_9, %c0_10, %c0_11] : memref<1x8x256xf32, #tpu.memory_space<vmem>>, vector<1x8x256xf32>
    %14 = vector.shape_cast %13 : vector<1x8x256xf32> to vector<8x256xf32>
    %15 = vector.shape_cast %12 : vector<8x256xf32> to vector<1x8x256xf32>
    tpu.vector_store %arg5[%c0_9, %c0_10, %c0_11], %15 {strides = array<i32>} : memref<1x8x256xf32, #tpu.memory_space<vmem>>, vector<1x8x256xf32>,
    return
  }
  func.func @transform_0(%arg0: i32) -> (i32, i32, i32) {
    %c0_i32 = arith.constant 0 : i32
    %c0_i32_0 = arith.constant 0 : i32
    %c0_i32_1 = arith.constant 0 : i32
    return %arg0, %c0_i32, %c0_i32_0 : i32, i32, i32
  }
  func.func @transform_1(%arg0: i32) -> (i32, i32) {
    %c0_i32 = arith.constant 0 : i32
    %c0_i32_0 = arith.constant 0 : i32
    %c0_i32_1 = arith.constant 0 : i32
    return %c0_i32, %c0_i32_0 : i32, i32
  }
  func.func @transform_2(%arg0: i32) -> (i32, i32) {
    %c0_i32 = arith.constant 0 : i32
    %c0_i32_0 = arith.constant 0 : i32
    %c0_i32_1 = arith.constant 0 : i32
    return %c0_i32, %c0_i32_0 : i32, i32
  }
  func.func @transform_3(%arg0: i32) -> (i32, i32) {
    %c0_i32 = arith.constant 0 : i32
    %c0_i32_0 = arith.constant 0 : i32
    %c0_i32_1 = arith.constant 0 : i32
    return %c0_i32, %c0_i32_0 : i32, i32
  }
  func.func @transform_4(%arg0: i32) -> (i32, i32, i32) {
    %c0_i32 = arith.constant 0 : i32
    %c0_i32_0 = arith.constant 0 : i32
    %c0_i32_1 = arith.constant 0 : i32
    return %arg0, %c0_i32, %c0_i32_0 : i32, i32, i32
  }
}

</mosaic_0001>

<llo_original>
// kernel: tpu_custom_call.1
$region0: #{tpu_custom_call.1}
  #allocation0 [shape = 'u32[]', space=smem, size = 0x4, offset = 0x4, fixed_abs, tag = 'smem constant byte address 0x4 - core index']
  #allocation1 [shape = 'u32[72,128]{1,0:T(1,128)}', space=vmem, size = 0x9000, scoped, tag = 'internal scratch']
  %s0 = inlined_call_operand.hbm [shape: f32[2,8,512], index: 0, kind: input, shape index: {}]
  %s1 = inlined_call_operand.hbm [shape: f32[8,8], index: 1, kind: input, shape index: {}]
  %s2 = inlined_call_operand.hbm [shape: f32[8,512], index: 2, kind: input, shape index: {}]
  %s3 = inlined_call_operand.hbm [shape: f32[512,512], index: 3, kind: input, shape index: {}]
  %s4 = inlined_call_operand.hbm [shape: f32[2,8,256], index: 4, kind: output, shape index: {}]
  %s5 = sld [smem:[#allocation0]]
  $region65: #{tpu_custom_call.1} parent=0
    _
  %s7 = ssub.s32 1, %s5
  %s8 = scalar_select 0, %s7, %s5
  $region1: #{tpu_custom_call.1} parent=0
    #allocation2 [shape = 'u8[32768]{0}', space=vmem, size = 0x8000, scoped, tag = 'input window, operand 0']
    #allocation3 [shape = 's32[2]{0}', space=sflag, size = 0x8, scoped, tag = 'scoped memory for tpu_custom_call.1']
    #allocation4 [shape = 's32[2]{0}', space=sflag, size = 0x8, scoped, tag = 'scoped memory for tpu_custom_call.1']
    #allocation5 [shape = 'u8[4096]{0}', space=vmem, size = 0x1000, scoped, tag = 'input window, operand 1, single buffered']
    #allocation6 [shape = 's32[1]{0}', space=sflag, size = 0x4, scoped, tag = 'scoped memory for tpu_custom_call.1']
    #allocation7 [shape = 'u8[16384]{0}', space=vmem, size = 0x4000, scoped, tag = 'input window, operand 2, single buffered']
    #allocation8 [shape = 'u8[1048576]{0}', space=vmem, size = 0x100000, scoped, tag = 'input window, operand 3, single buffered']
    #allocation9 [shape = 's32[1]{0}', space=sflag, size = 0x4, scoped, tag = 'scoped memory for tpu_custom_call.1']
    #allocation10 [shape = 'u8[16384]{0}', space=vmem, size = 0x4000, scoped, tag = 'output window, operand 0']
    %9 = vsyncpa [#allocation3], 0
    %s10 = scalar_lea.sflag [#allocation3], 1
    %11 = vsyncpa %s10, 0
    %12 = vsyncpa [#allocation6], 0
    %13 = vsyncpa [#allocation9], 0
    %14 = vsyncpa [#allocation4], 0
    %s15 = scalar_lea.sflag [#allocation4], 1
    %16 = vsyncpa %s15, 0
    loop: start=0, step=1, limit=4
    $region2: #{tpu_custom_call.1} parent=1 // loop_pre_header
      _
    $region3: #{tpu_custom_call.1} parent=1 // loop_header
      %s18 = sphi 0, %s22
      %p19 = scmp.ge.s32.totalorder %s18, 4
      %s28 = sphi 0, %s30
      %s31 = sphi 0, %s28
      %s32 = sphi 0, %s31
      %s48 = sphi 0, %s32
      %s52 = sphi 0, %s52
      %s54 = sphi 0, %s52
      %s55 = sphi 0, %s54
      %s69 = sphi 0, %s55
      %s73 = sphi 0, %s73
      %s75 = sphi 0, %s73
      %s76 = sphi 0, %s75
      %s90 = sphi 0, %s76
      %s94 = sphi 0, %s94
      %s96 = sphi 0, %s94
      %s97 = sphi 0, %s96
      %s111 = sphi 0, %s97
      %s117 = sphi 0, %s119
      %s120 = sphi 0, %s117
      %s121 = sphi 0, %s120
      %s137 = sphi 0, %s121
    $region4: #{tpu_custom_call.1} parent=1 // loop_header_branch
      %21 = sbr.rel (%p19) target = $region8
    $region5: #{tpu_custom_call.1} parent=1 // loop_body
      %s23 = ssub.s32 %s18, 1
      %s24 = ssub.s32 %s18, 2
      %s25 = sadd.s32 %s18, 1
      %s26 = ssub.s32 %s18, %s25
      %p27 = scmp.eq.s32.totalorder %s26, 0
      %s29 = sadd.s32 %s28, 1
      %s30 = scalar_select %p27, %s28, %s29
      %p33 = pneg %p27
      %p34 = scmp.eq.s32.totalorder %s18, 1
      %p35 = por %p33, %p34
      %p36 = scmp.ne.s32.totalorder %s28, %s31
      %p37 = scmp.eq.s32.totalorder %s18, 0
      %p38 = por %p36, %p37
      %p39 = scmp.ne.s32.totalorder %s28, %s31
      %p40 = scmp.eq.s32.totalorder %s23, 1
      %p41 = por %p39, %p40
      %p42 = scmp.ne.s32.totalorder %s31, %s32
      %p43 = scmp.eq.s32.totalorder %s23, 0
      %p44 = por %p42, %p43
      %p45 = scmp.ne.s32.totalorder %s31, %s32
      %p46 = scmp.eq.s32.totalorder %s24, 1
      %p47 = por %p45, %p46
      %p49 = scmp.ne.s32.totalorder %s32, %s48
      %p50 = scmp.eq.s32.totalorder %s24, 0
      %p51 = por %p49, %p50
      %s53 = sadd.s32 %s52, 1
      %p56 = scmp.eq.s32.totalorder %s18, 1
      %p57 = scmp.ne.s32.totalorder %s52, %s54
      %p58 = scmp.eq.s32.totalorder %s18, 0
      %p59 = por %p57, %p58
      %p60 = scmp.ne.s32.totalorder %s52, %s54
      %p61 = scmp.eq.s32.totalorder %s23, 1
      %p62 = por %p60, %p61
      %p63 = scmp.ne.s32.totalorder %s54, %s55
      %p64 = scmp.eq.s32.totalorder %s23, 0
      %p65 = por %p63, %p64
      %p66 = scmp.ne.s32.totalorder %s54, %s55
      %p67 = scmp.eq.s32.totalorder %s24, 1
      %p68 = por %p66, %p67
      %p70 = scmp.ne.s32.totalorder %s55, %s69
      %p71 = scmp.eq.s32.totalorder %s24, 0
      %p72 = por %p70, %p71
      %s74 = sadd.s32 %s73, 1
      %p77 = scmp.eq.s32.totalorder %s18, 1
      %p78 = scmp.ne.s32.totalorder %s73, %s75
      %p79 = scmp.eq.s32.totalorder %s18, 0
      %p80 = por %p78, %p79
      %p81 = scmp.ne.s32.totalorder %s73, %s75
      %p82 = scmp.eq.s32.totalorder %s23, 1
      %p83 = por %p81, %p82
      %p84 = scmp.ne.s32.totalorder %s75, %s76
      %p85 = scmp.eq.s32.totalorder %s23, 0
      %p86 = por %p84, %p85
      %p87 = scmp.ne.s32.totalorder %s75, %s76
      %p88 = scmp.eq.s32.totalorder %s24, 1
      %p89 = por %p87, %p88
      %p91 = scmp.ne.s32.totalorder %s76, %s90
      %p92 = scmp.eq.s32.totalorder %s24, 0
      %p93 = por %p91, %p92
      %s95 = sadd.s32 %s94, 1
      %p98 = scmp.eq.s32.totalorder %s18, 1
      %p99 = scmp.ne.s32.totalorder %s94, %s96
      %p100 = scmp.eq.s32.totalorder %s18, 0
      %p101 = por %p99, %p100
      %p102 = scmp.ne.s32.totalorder %s94, %s96
      %p103 = scmp.eq.s32.totalorder %s23, 1
      %p104 = por %p102, %p103
      %p105 = scmp.ne.s32.totalorder %s96, %s97
      %p106 = scmp.eq.s32.totalorder %s23, 0
      %p107 = por %p105, %p106
      %p108 = scmp.ne.s32.totalorder %s96, %s97
      %p109 = scmp.eq.s32.totalorder %s24, 1
      %p110 = por %p108, %p109
      %p112 = scmp.ne.s32.totalorder %s97, %s111
      %p113 = scmp.eq.s32.totalorder %s24, 0
      %p114 = por %p112, %p113
      %s115 = ssub.s32 %s18, %s25
      %p116 = scmp.eq.s32.totalorder %s115, 0
      %s118 = sadd.s32 %s117, 1
      %s119 = scalar_select %p116, %s117, %s118
      %p122 = pneg %p116
      %p123 = scmp.eq.s32.totalorder %s18, 1
      %p124 = por %p122, %p123
      %p125 = scmp.ne.s32.totalorder %s117, %s120
      %p126 = scmp.eq.s32.totalorder %s18, 0
      %p127 = por %p125, %p126
      %p128 = scmp.ne.s32.totalorder %s117, %s120
      %p129 = scmp.eq.s32.totalorder %s23, 1
      %p130 = por %p128, %p129
      %p131 = scmp.ne.s32.totalorder %s120, %s121
      %p132 = scmp.eq.s32.totalorder %s23, 0
      %p133 = por %p131, %p132
      %p134 = scmp.ne.s32.totalorder %s120, %s121
      %p135 = scmp.eq.s32.totalorder %s24, 1
      %p136 = por %p134, %p135
      %p138 = scmp.ne.s32.totalorder %s121, %s137
      %p139 = scmp.eq.s32.totalorder %s24, 0
      %p140 = por %p138, %p139
      %p141 = scmp.le.s32.totalorder 1, %s18
      %p142 = scmp.lt.s32.totalorder %s18, 3
      %p143 = pnand %p141, %p142
      %p144 = pneg %p143
      // Predicated region
      $region9: #{tpu_custom_call.1} parent=5 // pred_check
        _
      $region10: #{tpu_custom_call.1} parent=5 // pred_check_branch
        %146 = sbr.rel (%p143) target = $region12
      $region11: #{tpu_custom_call.1} parent=5 // pred_region
        %s147 = ssub.s32 %s18, 1
        // Predicated region
        $region13: #{tpu_custom_call.1} parent=11 // pred_check
          %p148 = pneg %p65
        $region14: #{tpu_custom_call.1} parent=11 // pred_check_branch
          %150 = sbr.rel (%p148) target = $region16
        $region15: #{tpu_custom_call.1} parent=11 // pred_region
          %152 = vsyncadd [#allocation6], 0
          %s154 = sshll.u32 %s1, 4
          %s155 = int_to_ptr.hbm [resolvable:$true] %s154
          %s156 = sshll.u32 [#allocation5], 4
          %s157 = int_to_ptr.vmem [resolvable:$true] %s156
          %159 = dma.hbm_to_vmem [thread:$0]  %s155, 128, %s157, [#allocation6]
        $region16: #{tpu_custom_call.1} parent=11 // pred_fallthru
          _
        // Predicated region
        $region17: #{tpu_custom_call.1} parent=11 // pred_check
          %p160 = pneg %p86
        $region18: #{tpu_custom_call.1} parent=11 // pred_check_branch
          %162 = sbr.rel (%p160) target = $region20
        $region19: #{tpu_custom_call.1} parent=11 // pred_region
          %164 = vsyncadd [#allocation6], 0
          %s166 = sshll.u32 %s2, 4
          %s167 = int_to_ptr.hbm [resolvable:$true] %s166
          %s168 = sshll.u32 [#allocation7], 4
          %s169 = int_to_ptr.vmem [resolvable:$true] %s168
          %171 = dma.hbm_to_vmem [thread:$0]  %s167, 512, %s169, [#allocation6]
        $region20: #{tpu_custom_call.1} parent=11 // pred_fallthru
          _
        // Predicated region
        $region21: #{tpu_custom_call.1} parent=11 // pred_check
          %p172 = pneg %p107
        $region22: #{tpu_custom_call.1} parent=11 // pred_check_branch
          %174 = sbr.rel (%p172) target = $region24
        $region23: #{tpu_custom_call.1} parent=11 // pred_region
          %176 = vsyncadd [#allocation9], 0
          %s177 = sshll.u32 %s3, 4
          %s178 = int_to_ptr.hbm [resolvable:$true] %s177
          %s179 = sshll.u32 [#allocation8], 4
          %s180 = int_to_ptr.vmem [resolvable:$true] %s179
          %185 = dma.hbm_to_vmem [thread:$0]  %s178, 32768, %s180, [#allocation9], 512, 512, 32
        $region24: #{tpu_custom_call.1} parent=11 // pred_fallthru
          _
      $region12: #{tpu_custom_call.1} parent=5 // pred_fallthru
        _
      %p186 = scmp.lt.s32.totalorder %s18, 2
      // Predicated region
      $region25: #{tpu_custom_call.1} parent=5 // pred_check
        %p187 = pneg %p186
      $region26: #{tpu_custom_call.1} parent=5 // pred_check_branch
        %189 = sbr.rel (%p187) target = $region28
      $region27: #{tpu_custom_call.1} parent=5 // pred_region
        // Predicated region
        $region29: #{tpu_custom_call.1} parent=27 // pred_check
          %p190 = pneg %p38
        $region30: #{tpu_custom_call.1} parent=27 // pred_check_branch
          %192 = sbr.rel (%p190) target = $region32
        $region31: #{tpu_custom_call.1} parent=27 // pred_region
          %s193 = sand.u32 %s28, 1
          %s194 = scalar_lea.sflag [#allocation3], %s193
          %s195 = sand.u32 %s28, 1
          %s196 = smul.addr %s195, 32
          %s197 = scalar_lea.vmem [#allocation2], %s196
          %199 = vsyncadd %s194, 0
          %s200 = smul.addr %s18, 4
          %s201 = smul.addr %s200, 8
          %s202 = scalar_lea.hbm %s0, %s201
          %s204 = sshll.u32 %s202, 4
          %s205 = int_to_ptr.hbm [resolvable:$true] %s204
          %s206 = sshll.u32 %s197, 4
          %s207 = int_to_ptr.vmem [resolvable:$true] %s206
          %209 = dma.hbm_to_vmem [thread:$0]  %s205, 512, %s207, %s194
        $region32: #{tpu_custom_call.1} parent=27 // pred_fallthru
          _
      $region28: #{tpu_custom_call.1} parent=5 // pred_fallthru
        _
      %p210 = scmp.le.s32.totalorder 1, %s18
      %p211 = scmp.lt.s32.totalorder %s18, 3
      %p212 = pnand %p210, %p211
      %p213 = pneg %p212
      // Predicated region
      $region33: #{tpu_custom_call.1} parent=5 // pred_check
        _
      $region34: #{tpu_custom_call.1} parent=5 // pred_check_branch
        %215 = sbr.rel (%p212) target = $region36
      $region35: #{tpu_custom_call.1} parent=5 // pred_region
        %s216 = ssub.s32 %s18, 1
        %s217 = sand.u32 %s31, 1
        %s218 = scalar_lea.sflag [#allocation3], %s217
        %s219 = sand.u32 %s31, 1
        %s220 = smul.addr %s219, 32
        %s221 = scalar_lea.vmem [#allocation2], %s220
        // Predicated region
        $region37: #{tpu_custom_call.1} parent=35 // pred_check
          %p222 = pneg %p44
        $region38: #{tpu_custom_call.1} parent=35 // pred_check_branch
          %224 = sbr.rel (%p222) target = $region40
        $region39: #{tpu_custom_call.1} parent=35 // pred_region
          %226 = dma.done %s218, 512
        $region40: #{tpu_custom_call.1} parent=35 // pred_fallthru
          _
        // Predicated region
        $region41: #{tpu_custom_call.1} parent=35 // pred_check
          %p227 = pneg %p65
        $region42: #{tpu_custom_call.1} parent=35 // pred_check_branch
          %229 = sbr.rel (%p227) target = $region44
        $region43: #{tpu_custom_call.1} parent=35 // pred_region
          %231 = dma.done [#allocation6], 128
        $region44: #{tpu_custom_call.1} parent=35 // pred_fallthru
          _
        // Predicated region
        $region45: #{tpu_custom_call.1} parent=35 // pred_check
          %p232 = pneg %p86
        $region46: #{tpu_custom_call.1} parent=35 // pred_check_branch
          %234 = sbr.rel (%p232) target = $region48
        $region47: #{tpu_custom_call.1} parent=35 // pred_region
          %236 = dma.done [#allocation6], 512
        $region48: #{tpu_custom_call.1} parent=35 // pred_fallthru
          _
        // Predicated region
        $region49: #{tpu_custom_call.1} parent=35 // pred_check
          %p237 = pneg %p107
        $region50: #{tpu_custom_call.1} parent=35 // pred_check_branch
          %239 = sbr.rel (%p237) target = $region52
        $region51: #{tpu_custom_call.1} parent=35 // pred_region
          %241 = dma.done [#allocation9], 32768
        $region52: #{tpu_custom_call.1} parent=35 // pred_fallthru
          _
        %s242 = sand.u32 %s31, 1
        %s243 = scalar_lea.sflag [#allocation3], %s242
        %s244 = sand.u32 %s31, 1
        %s245 = smul.addr %s244, 32
        %s246 = scalar_lea.vmem [#allocation2], %s245
        %p247 = pneg %p44
        %p248 = pneg %p41
        %p249 = pneg %p65
        %p250 = pneg %p62
        %p251 = pneg %p86
        %p252 = pneg %p83
        %p253 = pneg %p107
        %p254 = pneg %p104
        %p255 = pneg %p133
        %p256 = pneg %p130
        %s257 = sand.u32 %s120, 1
        %s258 = scalar_lea.sflag [#allocation4], %s257
        %s259 = sand.u32 %s120, 1
        %s260 = smul.addr %s259, 16
        %s261 = scalar_lea.vmem [#allocation10], %s260
        %v262 = vld [vmem:[%s221] sm:$0xff]
        %v263 = vld [vmem:[%s221 + $0x8] sm:$0xff]
        %v264 = vld [vmem:[%s221 + $0x10] sm:$0xff]
        %v265 = vld [vmem:[%s221 + $0x18] sm:$0xff]
        %v266 = vld [vmem:[#allocation5] sm:$0xff]
        %v267 = vld [vmem:[#allocation7] sm:$0xff]
        %v268 = vld [vmem:[#allocation7 + $0x8] sm:$0xff]
        %v269 = vld [vmem:[#allocation7 + $0x10] sm:$0xff]
        %v270 = vld [vmem:[#allocation7 + $0x18] sm:$0xff]
        %vm271 = vcmask 64512
        %v273 = vsel %vm271, %v266, 0
        %275 = vmatpush.msra.mxu0 0.0
        %276 = vmatpush.msra.mxu0 0.0
        %277 = vmatpush.msra.mxu0 0.0
        %278 = vmatpush.msra.mxu0 0.0
        %279 = vmatpush.msra.mxu0 0.0
        %280 = vmatpush.msra.mxu0 0.0
        %281 = vmatpush.msra.mxu0 0.0
        %282 = vmatpush.msra.mxu0 0.0
        %283 = vmatpush.msra.mxu0 0.0
        %284 = vmatpush.msra.mxu0 0.0
        %285 = vmatpush.msra.mxu0 0.0
        %286 = vmatpush.msra.mxu0 0.0
        %287 = vmatpush.msra.mxu0 0.0
        %288 = vmatpush.msra.mxu0 0.0
        %289 = vmatpush.msra.mxu0 0.0
        %290 = vmatpush.msra.mxu0 %v262
        %291 = vmatmul.f32.gmra.mxu0 %v273
        %v292 = vpop.f32.mrf.mxu0
        %v293 = vadd.f32 %v267, %v292
        %294 = vdwg.mxu0
        %295 = vmatpush.msra.mxu0 0.0
        %296 = vmatpush.msra.mxu0 0.0
        %297 = vmatpush.msra.mxu0 0.0
        %298 = vmatpush.msra.mxu0 0.0
        %299 = vmatpush.msra.mxu0 0.0
        %300 = vmatpush.msra.mxu0 0.0
        %301 = vmatpush.msra.mxu0 0.0
        %302 = vmatpush.msra.mxu0 0.0
        %303 = vmatpush.msra.mxu0 0.0
        %304 = vmatpush.msra.mxu0 0.0
        %305 = vmatpush.msra.mxu0 0.0
        %306 = vmatpush.msra.mxu0 0.0
        %307 = vmatpush.msra.mxu0 0.0
        %308 = vmatpush.msra.mxu0 0.0
        %309 = vmatpush.msra.mxu0 0.0
        %310 = vmatpush.msra.mxu0 %v263
        %311 = vmatmul.f32.gmra.mxu0 %v273
        %v312 = vpop.f32.mrf.mxu0
        %v313 = vadd.f32 %v268, %v312
        %314 = vdwg.mxu0
        %315 = vmatpush.msra.mxu0 0.0
        %316 = vmatpush.msra.mxu0 0.0
        %317 = vmatpush.msra.mxu0 0.0
        %318 = vmatpush.msra.mxu0 0.0
        %319 = vmatpush.msra.mxu0 0.0
        %320 = vmatpush.msra.mxu0 0.0
        %321 = vmatpush.msra.mxu0 0.0
        %322 = vmatpush.msra.mxu0 0.0
        %323 = vmatpush.msra.mxu0 0.0
        %324 = vmatpush.msra.mxu0 0.0
        %325 = vmatpush.msra.mxu0 0.0
        %326 = vmatpush.msra.mxu0 0.0
        %327 = vmatpush.msra.mxu0 0.0
        %328 = vmatpush.msra.mxu0 0.0
        %329 = vmatpush.msra.mxu0 0.0
        %330 = vmatpush.msra.mxu0 %v264
        %331 = vmatmul.f32.gmra.mxu0 %v273
        %v332 = vpop.f32.mrf.mxu0
        %v333 = vadd.f32 %v269, %v332
        %334 = vdwg.mxu0
        %335 = vmatpush.msra.mxu0 0.0
        %336 = vmatpush.msra.mxu0 0.0
        %337 = vmatpush.msra.mxu0 0.0
        %338 = vmatpush.msra.mxu0 0.0
        %339 = vmatpush.msra.mxu0 0.0
        %340 = vmatpush.msra.mxu0 0.0
        %341 = vmatpush.msra.mxu0 0.0
        %342 = vmatpush.msra.mxu0 0.0
        %343 = vmatpush.msra.mxu0 0.0
        %344 = vmatpush.msra.mxu0 0.0
        %345 = vmatpush.msra.mxu0 0.0
        %346 = vmatpush.msra.mxu0 0.0
        %347 = vmatpush.msra.mxu0 0.0
        %348 = vmatpush.msra.mxu0 0.0
        %349 = vmatpush.msra.mxu0 0.0
        %350 = vmatpush.msra.mxu0 %v265
        %351 = vmatmul.f32.gmra.mxu0 %v273
        %v352 = vpop.f32.mrf.mxu0
        %v353 = vadd.f32 %v270, %v352
        %354 = vdwg.mxu0
        %v355 = vld [vmem:[#allocation8] sm:$0xff]
        %v356 = vld [vmem:[#allocation8 + $0x8] sm:$0xff]
        %v357 = vld [vmem:[#allocation8 + $0x10] sm:$0xff]
        %v358 = vld [vmem:[#allocation8 + $0x18] sm:$0xff]
        %v359 = vld [vmem:[#allocation8 + $0x20] sm:$0xff]
        %v360 = vld [vmem:[#allocation8 + $0x28] sm:$0xff]
        %v361 = vld [vmem:[#allocation8 + $0x30] sm:$0xff]
        %v362 = vld [vmem:[#allocation8 + $0x38] sm:$0xff]
        %v363 = vld [vmem:[#allocation8 + $0x40] sm:$0xff]
        %v364 = vld [vmem:[#allocation8 + $0x48] sm:$0xff]
        %v365 = vld [vmem:[#allocation8 + $0x50] sm:$0xff]
        %v366 = vld [vmem:[#allocation8 + $0x58] sm:$0xff]
        %v367 = vld [vmem:[#allocation8 + $0x60] sm:$0xff]
        %v368 = vld [vmem:[#allocation8 + $0x68] sm:$0xff]
        %v369 = vld [vmem:[#allocation8 + $0x70] sm:$0xff]
        %v370 = vld [vmem:[#allocation8 + $0x78] sm:$0xff]
        %v371 = vld [vmem:[#allocation8 + $0x80] sm:$0xff]
        %v372 = vld [vmem:[#allocation8 + $0x88] sm:$0xff]
        %v373 = vld [vmem:[#allocation8 + $0x90] sm:$0xff]
        %v374 = vld [vmem:[#allocation8 + $0x98] sm:$0xff]
        %v375 = vld [vmem:[#allocation8 + $0xa0] sm:$0xff]
        %v376 = vld [vmem:[#allocation8 + $0xa8] sm:$0xff]
        %v377 = vld [vmem:[#allocation8 + $0xb0] sm:$0xff]
        %v378 = vld [vmem:[#allocation8 + $0xb8] sm:$0xff]
        %v379 = vld [vmem:[#allocation8 + $0xc0] sm:$0xff]
        %v380 = vld [vmem:[#allocation8 + $0xc8] sm:$0xff]
        %v381 = vld [vmem:[#allocation8 + $0xd0] sm:$0xff]
        %v382 = vld [vmem:[#allocation8 + $0xd8] sm:$0xff]
        %v383 = vld [vmem:[#allocation8 + $0xe0] sm:$0xff]
        %v384 = vld [vmem:[#allocation8 + $0xe8] sm:$0xff]
        %v385 = vld [vmem:[#allocation8 + $0xf0] sm:$0xff]
        %v386 = vld [vmem:[#allocation8 + $0xf8] sm:$0xff]
        %v387 = vld [vmem:[#allocation8 + $0x100] sm:$0xff]
        %v388 = vld [vmem:[#allocation8 + $0x108] sm:$0xff]
        %v389 = vld [vmem:[#allocation8 + $0x110] sm:$0xff]
        %v390 = vld [vmem:[#allocation8 + $0x118] sm:$0xff]
        %v391 = vld [vmem:[#allocation8 + $0x120] sm:$0xff]
        %v392 = vld [vmem:[#allocation8 + $0x128] sm:$0xff]
        %v393 = vld [vmem:[#allocation8 + $0x130] sm:$0xff]
        %v394 = vld [vmem:[#allocation8 + $0x138] sm:$0xff]
        %v395 = vld [vmem:[#allocation8 + $0x140] sm:$0xff]
        %v396 = vld [vmem:[#allocation8 + $0x148] sm:$0xff]
        %v397 = vld [vmem:[#allocation8 + $0x150] sm:$0xff]
        %v398 = vld [vmem:[#allocation8 + $0x158] sm:$0xff]
        %v399 = vld [vmem:[#allocation8 + $0x160] sm:$0xff]
        %v400 = vld [vmem:[#allocation8 + $0x168] sm:$0xff]
        %v401 = vld [vmem:[#allocation8 + $0x170] sm:$0xff]
        %v402 = vld [vmem:[#allocation8 + $0x178] sm:$0xff]
        %v403 = vld [vmem:[#allocation8 + $0x180] sm:$0xff]
        %v404 = vld [vmem:[#allocation8 + $0x188] sm:$0xff]
        %v405 = vld [vmem:[#allocation8 + $0x190] sm:$0xff]
        %v406 = vld [vmem:[#allocation8 + $0x198] sm:$0xff]
        %v407 = vld [vmem:[#allocation8 + $0x1a0] sm:$0xff]
        %v408 = vld [vmem:[#allocation8 + $0x1a8] sm:$0xff]
        %v409 = vld [vmem:[#allocation8 + $0x1b0] sm:$0xff]
        %v410 = vld [vmem:[#allocation8 + $0x1b8] sm:$0xff]
        %v411 = vld [vmem:[#allocation8 + $0x1c0] sm:$0xff]
        %v412 = vld [vmem:[#allocation8 + $0x1c8] sm:$0xff]
        %v413 = vld [vmem:[#allocation8 + $0x1d0] sm:$0xff]
        %v414 = vld [vmem:[#allocation8 + $0x1d8] sm:$0xff]
        %v415 = vld [vmem:[#allocation8 + $0x1e0] sm:$0xff]
        %v416 = vld [vmem:[#allocation8 + $0x1e8] sm:$0xff]
        %v417 = vld [vmem:[#allocation8 + $0x1f0] sm:$0xff]
        %v418 = vld [vmem:[#allocation8 + $0x1f8] sm:$0xff]
        %v419 = vld [vmem:[#allocation8 + $0x200] sm:$0xff]
        %v420 = vld [vmem:[#allocation8 + $0x208] sm:$0xff]
        %v421 = vld [vmem:[#allocation8 + $0x210] sm:$0xff]
        %v422 = vld [vmem:[#allocation8 + $0x218] sm:$0xff]
        %v423 = vld [vmem:[#allocation8 + $0x220] sm:$0xff]
        %v424 = vld [vmem:[#allocation8 + $0x228] sm:$0xff]
        %v425 = vld [vmem:[#allocation8 + $0x230] sm:$0xff]
        %v426 = vld [vmem:[#allocation8 + $0x238] sm:$0xff]
        %v427 = vld [vmem:[#allocation8 + $0x240] sm:$0xff]
        %v428 = vld [vmem:[#allocation8 + $0x248] sm:$0xff]
        %v429 = vld [vmem:[#allocation8 + $0x250] sm:$0xff]
        %v430 = vld [vmem:[#allocation8 + $0x258] sm:$0xff]
        %v431 = vld [vmem:[#allocation8 + $0x260] sm:$0xff]
        %v432 = vld [vmem:[#allocation8 + $0x268] sm:$0xff]
        %v433 = vld [vmem:[#allocation8 + $0x270] sm:$0xff]
        %v434 = vld [vmem:[#allocation8 + $0x278] sm:$0xff]
        %v435 = vld [vmem:[#allocation8 + $0x280] sm:$0xff]
        %v436 = vld [vmem:[#allocation8 + $0x288] sm:$0xff]
        %v437 = vld [vmem:[#allocation8 + $0x290] sm:$0xff]
        %v438 = vld [vmem:[#allocation8 + $0x298] sm:$0xff]
        %v439 = vld [vmem:[#allocation8 + $0x2a0] sm:$0xff]
        %v440 = vld [vmem:[#allocation8 + $0x2a8] sm:$0xff]
        %v441 = vld [vmem:[#allocation8 + $0x2b0] sm:$0xff]
        %v442 = vld [vmem:[#allocation8 + $0x2b8] sm:$0xff]
        %v443 = vld [vmem:[#allocation8 + $0x2c0] sm:$0xff]
        %v444 = vld [vmem:[#allocation8 + $0x2c8] sm:$0xff]
        %v445 = vld [vmem:[#allocation8 + $0x2d0] sm:$0xff]
        %v446 = vld [vmem:[#allocation8 + $0x2d8] sm:$0xff]
        %v447 = vld [vmem:[#allocation8 + $0x2e0] sm:$0xff]
        %v448 = vld [vmem:[#allocation8 + $0x2e8] sm:$0xff]
        %v449 = vld [vmem:[#allocation8 + $0x2f0] sm:$0xff]
        %v450 = vld [vmem:[#allocation8 + $0x2f8] sm:$0xff]
        %v451 = vld [vmem:[#allocation8 + $0x300] sm:$0xff]
        %v452 = vld [vmem:[#allocation8 + $0x308] sm:$0xff]
        %v453 = vld [vmem:[#allocation8 + $0x310] sm:$0xff]
        %v454 = vld [vmem:[#allocation8 + $0x318] sm:$0xff]
        %v455 = vld [vmem:[#allocation8 + $0x320] sm:$0xff]
        %v456 = vld [vmem:[#allocation8 + $0x328] sm:$0xff]
        %v457 = vld [vmem:[#allocation8 + $0x330] sm:$0xff]
        %v458 = vld [vmem:[#allocation8 + $0x338] sm:$0xff]
        %v459 = vld [vmem:[#allocation8 + $0x340] sm:$0xff]
        %v460 = vld [vmem:[#allocation8 + $0x348] sm:$0xff]
        %v461 = vld [vmem:[#allocation8 + $0x350] sm:$0xff]
        %v462 = vld [vmem:[#allocation8 + $0x358] sm:$0xff]
        %v463 = vld [vmem:[#allocation8 + $0x360] sm:$0xff]
        %v464 = vld [vmem:[#allocation8 + $0x368] sm:$0xff]
        %v465 = vld [vmem:[#allocation8 + $0x370] sm:$0xff]
        %v466 = vld [vmem:[#allocation8 + $0x378] sm:$0xff]
        %v467 = vld [vmem:[#allocation8 + $0x380] sm:$0xff]
        %v468 = vld [vmem:[#allocation8 + $0x388] sm:$0xff]
        %v469 = vld [vmem:[#allocation8 + $0x390] sm:$0xff]
        %v470 = vld [vmem:[#allocation8 + $0x398] sm:$0xff]
        %v471 = vld [vmem:[#allocation8 + $0x3a0] sm:$0xff]
        %v472 = vld [vmem:[#allocation8 + $0x3a8] sm:$0xff]
        %v473 = vld [vmem:[#allocation8 + $0x3b0] sm:$0xff]
        %v474 = vld [vmem:[#allocation8 + $0x3b8] sm:$0xff]
        %v475 = vld [vmem:[#allocation8 + $0x3c0] sm:$0xff]
        %v476 = vld [vmem:[#allocation8 + $0x3c8] sm:$0xff]
        %v477 = vld [vmem:[#allocation8 + $0x3d0] sm:$0xff]
        %v478 = vld [vmem:[#allocation8 + $0x3d8] sm:$0xff]
        %v479 = vld [vmem:[#allocation8 + $0x3e0] sm:$0xff]
        %v480 = vld [vmem:[#allocation8 + $0x3e8] sm:$0xff]
        %v481 = vld [vmem:[#allocation8 + $0x3f0] sm:$0xff]
        %v482 = vld [vmem:[#allocation8 + $0x3f8] sm:$0xff]
        %v483 = vld [vmem:[#allocation8 + $0x400] sm:$0xff]
        %v484 = vld [vmem:[#allocation8 + $0x408] sm:$0xff]
        %v485 = vld [vmem:[#allocation8 + $0x410] sm:$0xff]
        %v486 = vld [vmem:[#allocation8 + $0x418] sm:$0xff]
        %v487 = vld [vmem:[#allocation8 + $0x420] sm:$0xff]
        %v488 = vld [vmem:[#allocation8 + $0x428] sm:$0xff]
        %v489 = vld [vmem:[#allocation8 + $0x430] sm:$0xff]
        %v490 = vld [vmem:[#allocation8 + $0x438] sm:$0xff]
        %v491 = vld [vmem:[#allocation8 + $0x440] sm:$0xff]
        %v492 = vld [vmem:[#allocation8 + $0x448] sm:$0xff]
        %v493 = vld [vmem:[#allocation8 + $0x450] sm:$0xff]
        %v494 = vld [vmem:[#allocation8 + $0x458] sm:$0xff]
        %v495 = vld [vmem:[#allocation8 + $0x460] sm:$0xff]
        %v496 = vld [vmem:[#allocation8 + $0x468] sm:$0xff]
        %v497 = vld [vmem:[#allocation8 + $0x470] sm:$0xff]
        %v498 = vld [vmem:[#allocation8 + $0x478] sm:$0xff]
        %v499 = vld [vmem:[#allocation8 + $0x480] sm:$0xff]
        %v500 = vld [vmem:[#allocation8 + $0x488] sm:$0xff]
        %v501 = vld [vmem:[#allocation8 + $0x490] sm:$0xff]
        %v502 = vld [vmem:[#allocation8 + $0x498] sm:$0xff]
        %v503 = vld [vmem:[#allocation8 + $0x4a0] sm:$0xff]
        %v504 = vld [vmem:[#allocation8 + $0x4a8] sm:$0xff]
        %v505 = vld [vmem:[#allocation8 + $0x4b0] sm:$0xff]
        %v506 = vld [vmem:[#allocation8 + $0x4b8] sm:$0xff]
        %v507 = vld [vmem:[#allocation8 + $0x4c0] sm:$0xff]
        %v508 = vld [vmem:[#allocation8 + $0x4c8] sm:$0xff]
        %v509 = vld [vmem:[#allocation8 + $0x4d0] sm:$0xff]
        %v510 = vld [vmem:[#allocation8 + $0x4d8] sm:$0xff]
        %v511 = vld [vmem:[#allocation8 + $0x4e0] sm:$0xff]
        %v512 = vld [vmem:[#allocation8 + $0x4e8] sm:$0xff]
        %v513 = vld [vmem:[#allocation8 + $0x4f0] sm:$0xff]
        %v514 = vld [vmem:[#allocation8 + $0x4f8] sm:$0xff]
        %v515 = vld [vmem:[#allocation8 + $0x500] sm:$0xff]
        %v516 = vld [vmem:[#allocation8 + $0x508] sm:$0xff]
        %v517 = vld [vmem:[#allocation8 + $0x510] sm:$0xff]
        %v518 = vld [vmem:[#allocation8 + $0x518] sm:$0xff]
        %v519 = vld [vmem:[#allocation8 + $0x520] sm:$0xff]
        %v520 = vld [vmem:[#allocation8 + $0x528] sm:$0xff]
        %v521 = vld [vmem:[#allocation8 + $0x530] sm:$0xff]
        %v522 = vld [vmem:[#allocation8 + $0x538] sm:$0xff]
        %v523 = vld [vmem:[#allocation8 + $0x540] sm:$0xff]
        %v524 = vld [vmem:[#allocation8 + $0x548] sm:$0xff]
        %v525 = vld [vmem:[#allocation8 + $0x550] sm:$0xff]
        %v526 = vld [vmem:[#allocation8 + $0x558] sm:$0xff]
        %v527 = vld [vmem:[#allocation8 + $0x560] sm:$0xff]
        %v528 = vld [vmem:[#allocation8 + $0x568] sm:$0xff]
        %v529 = vld [vmem:[#allocation8 + $0x570] sm:$0xff]
        %v530 = vld [vmem:[#allocation8 + $0x578] sm:$0xff]
        %v531 = vld [vmem:[#allocation8 + $0x580] sm:$0xff]
        %v532 = vld [vmem:[#allocation8 + $0x588] sm:$0xff]
        %v533 = vld [vmem:[#allocation8 + $0x590] sm:$0xff]
        %v534 = vld [vmem:[#allocation8 + $0x598] sm:$0xff]
        %v535 = vld [vmem:[#allocation8 + $0x5a0] sm:$0xff]
        %v536 = vld [vmem:[#allocation8 + $0x5a8] sm:$0xff]
        %v537 = vld [vmem:[#allocation8 + $0x5b0] sm:$0xff]
        %v538 = vld [vmem:[#allocation8 + $0x5b8] sm:$0xff]
        %v539 = vld [vmem:[#allocation8 + $0x5c0] sm:$0xff]
        %v540 = vld [vmem:[#allocation8 + $0x5c8] sm:$0xff]
        %v541 = vld [vmem:[#allocation8 + $0x5d0] sm:$0xff]
        %v542 = vld [vmem:[#allocation8 + $0x5d8] sm:$0xff]
        %v543 = vld [vmem:[#allocation8 + $0x5e0] sm:$0xff]
        %v544 = vld [vmem:[#allocation8 + $0x5e8] sm:$0xff]
        %v545 = vld [vmem:[#allocation8 + $0x5f0] sm:$0xff]
        %v546 = vld [vmem:[#allocation8 + $0x5f8] sm:$0xff]
        %v547 = vld [vmem:[#allocation8 + $0x600] sm:$0xff]
        %v548 = vld [vmem:[#allocation8 + $0x608] sm:$0xff]
        %v549 = vld [vmem:[#allocation8 + $0x610] sm:$0xff]
        %v550 = vld [vmem:[#allocation8 + $0x618] sm:$0xff]
        %v551 = vld [vmem:[#allocation8 + $0x620] sm:$0xff]
        %v552 = vld [vmem:[#allocation8 + $0x628] sm:$0xff]
        %v553 = vld [vmem:[#allocation8 + $0x630] sm:$0xff]
        %v554 = vld [vmem:[#allocation8 + $0x638] sm:$0xff]
        %v555 = vld [vmem:[#allocation8 + $0x640] sm:$0xff]
        %v556 = vld [vmem:[#allocation8 + $0x648] sm:$0xff]
        %v557 = vld [vmem:[#allocation8 + $0x650] sm:$0xff]
        %v558 = vld [vmem:[#allocation8 + $0x658] sm:$0xff]
        %v559 = vld [vmem:[#allocation8 + $0x660] sm:$0xff]
        %v560 = vld [vmem:[#allocation8 + $0x668] sm:$0xff]
        %v561 = vld [vmem:[#allocation8 + $0x670] sm:$0xff]
        %v562 = vld [vmem:[#allocation8 + $0x678] sm:$0xff]
        %v563 = vld [vmem:[#allocation8 + $0x680] sm:$0xff]
        %v564 = vld [vmem:[#allocation8 + $0x688] sm:$0xff]
        %v565 = vld [vmem:[#allocation8 + $0x690] sm:$0xff]
        %v566 = vld [vmem:[#allocation8 + $0x698] sm:$0xff]
        %v567 = vld [vmem:[#allocation8 + $0x6a0] sm:$0xff]
        %v568 = vld [vmem:[#allocation8 + $0x6a8] sm:$0xff]
        %v569 = vld [vmem:[#allocation8 + $0x6b0] sm:$0xff]
        %v570 = vld [vmem:[#allocation8 + $0x6b8] sm:$0xff]
        %v571 = vld [vmem:[#allocation8 + $0x6c0] sm:$0xff]
        %v572 = vld [vmem:[#allocation8 + $0x6c8] sm:$0xff]
        %v573 = vld [vmem:[#allocation8 + $0x6d0] sm:$0xff]
        %v574 = vld [vmem:[#allocation8 + $0x6d8] sm:$0xff]
        %v575 = vld [vmem:[#allocation8 + $0x6e0] sm:$0xff]
        %v576 = vld [vmem:[#allocation8 + $0x6e8] sm:$0xff]
        %v577 = vld [vmem:[#allocation8 + $0x6f0] sm:$0xff]
        %v578 = vld [vmem:[#allocation8 + $0x6f8] sm:$0xff]
        %v579 = vld [vmem:[#allocation8 + $0x700] sm:$0xff]
        %v580 = vld [vmem:[#allocation8 + $0x708] sm:$0xff]
        %v581 = vld [vmem:[#allocation8 + $0x710] sm:$0xff]
        %v582 = vld [vmem:[#allocation8 + $0x718] sm:$0xff]
        %v583 = vld [vmem:[#allocation8 + $0x720] sm:$0xff]
        %v584 = vld [vmem:[#allocation8 + $0x728] sm:$0xff]
        %v585 = vld [vmem:[#allocation8 + $0x730] sm:$0xff]
        %v586 = vld [vmem:[#allocation8 + $0x738] sm:$0xff]
        %v587 = vld [vmem:[#allocation8 + $0x740] sm:$0xff]
        %v588 = vld [vmem:[#allocation8 + $0x748] sm:$0xff]
        %v589 = vld [vmem:[#allocation8 + $0x750] sm:$0xff]
        %v590 = vld [vmem:[#allocation8 + $0x758] sm:$0xff]
        %v591 = vld [vmem:[#allocation8 + $0x760] sm:$0xff]
        %v592 = vld [vmem:[#allocation8 + $0x768] sm:$0xff]
        %v593 = vld [vmem:[#allocation8 + $0x770] sm:$0xff]
        %v594 = vld [vmem:[#allocation8 + $0x778] sm:$0xff]
        %v595 = vld [vmem:[#allocation8 + $0x780] sm:$0xff]
        %v596 = vld [vmem:[#allocation8 + $0x788] sm:$0xff]
        %v597 = vld [vmem:[#allocation8 + $0x790] sm:$0xff]
        %v598 = vld [vmem:[#allocation8 + $0x798] sm:$0xff]
        %v599 = vld [vmem:[#allocation8 + $0x7a0] sm:$0xff]
        %v600 = vld [vmem:[#allocation8 + $0x7a8] sm:$0xff]
        %v601 = vld [vmem:[#allocation8 + $0x7b0] sm:$0xff]
        %v602 = vld [vmem:[#allocation8 + $0x7b8] sm:$0xff]
        %v603 = vld [vmem:[#allocation8 + $0x7c0] sm:$0xff]
        %v604 = vld [vmem:[#allocation8 + $0x7c8] sm:$0xff]
        %v605 = vld [vmem:[#allocation8 + $0x7d0] sm:$0xff]
        %v606 = vld [vmem:[#allocation8 + $0x7d8] sm:$0xff]
        %v607 = vld [vmem:[#allocation8 + $0x7e0] sm:$0xff]
        %v608 = vld [vmem:[#allocation8 + $0x7e8] sm:$0xff]
        %v609 = vld [vmem:[#allocation8 + $0x7f0] sm:$0xff]
        %v610 = vld [vmem:[#allocation8 + $0x7f8] sm:$0xff]
        %611 = vmatpush.msra.mxu0 %v415
        %612 = vmatpush.msra.mxu0 %v411
        %613 = vmatpush.msra.mxu0 %v407
        %614 = vmatpush.msra.mxu0 %v403
        %615 = vmatpush.msra.mxu0 %v399
        %616 = vmatpush.msra.mxu0 %v395
        %617 = vmatpush.msra.mxu0 %v391
        %618 = vmatpush.msra.mxu0 %v387
        %619 = vmatpush.msra.mxu0 %v383
        %620 = vmatpush.msra.mxu0 %v379
        %621 = vmatpush.msra.mxu0 %v375
        %622 = vmatpush.msra.mxu0 %v371
        %623 = vmatpush.msra.mxu0 %v367
        %624 = vmatpush.msra.mxu0 %v363
        %625 = vmatpush.msra.mxu0 %v359
        %626 = vmatpush.msra.mxu0 %v355
        %627 = vmatmul.f32.gmra.mxu0 %v293
        %v628 = vpop.f32.mrf.mxu0
        %v629 = vadd.f32 0.0, %v628
        %630 = vdwg.mxu0
        %631 = vmatpush.msra.mxu0 %v479
        %632 = vmatpush.msra.mxu0 %v475
        %633 = vmatpush.msra.mxu0 %v471
        %634 = vmatpush.msra.mxu0 %v467
        %635 = vmatpush.msra.mxu0 %v463
        %636 = vmatpush.msra.mxu0 %v459
        %637 = vmatpush.msra.mxu0 %v455
        %638 = vmatpush.msra.mxu0 %v451
        %639 = vmatpush.msra.mxu0 %v447
        %640 = vmatpush.msra.mxu0 %v443
        %641 = vmatpush.msra.mxu0 %v439
        %642 = vmatpush.msra.mxu0 %v435
        %643 = vmatpush.msra.mxu0 %v431
        %644 = vmatpush.msra.mxu0 %v427
        %645 = vmatpush.msra.mxu0 %v423
        %646 = vmatpush.msra.mxu0 %v419
        %647 = vmatmul.f32.gmra.mxu0 %v313
        %v648 = vpop.f32.mrf.mxu0
        %v649 = vadd.f32 %v629, %v648
        %650 = vdwg.mxu0
        %651 = vmatpush.msra.mxu0 %v543
        %652 = vmatpush.msra.mxu0 %v539
        %653 = vmatpush.msra.mxu0 %v535
        %654 = vmatpush.msra.mxu0 %v531
        %655 = vmatpush.msra.mxu0 %v527
        %656 = vmatpush.msra.mxu0 %v523
        %657 = vmatpush.msra.mxu0 %v519
        %658 = vmatpush.msra.mxu0 %v515
        %659 = vmatpush.msra.mxu0 %v511
        %660 = vmatpush.msra.mxu0 %v507
        %661 = vmatpush.msra.mxu0 %v503
        %662 = vmatpush.msra.mxu0 %v499
        %663 = vmatpush.msra.mxu0 %v495
        %664 = vmatpush.msra.mxu0 %v491
        %665 = vmatpush.msra.mxu0 %v487
        %666 = vmatpush.msra.mxu0 %v483
        %667 = vmatmul.f32.gmra.mxu0 %v333
        %v668 = vpop.f32.mrf.mxu0
        %v669 = vadd.f32 %v649, %v668
        %670 = vdwg.mxu0
        %671 = vmatpush.msra.mxu0 %v607
        %672 = vmatpush.msra.mxu0 %v603
        %673 = vmatpush.msra.mxu0 %v599
        %674 = vmatpush.msra.mxu0 %v595
        %675 = vmatpush.msra.mxu0 %v591
        %676 = vmatpush.msra.mxu0 %v587
        %677 = vmatpush.msra.mxu0 %v583
        %678 = vmatpush.msra.mxu0 %v579
        %679 = vmatpush.msra.mxu0 %v575
        %680 = vmatpush.msra.mxu0 %v571
        %681 = vmatpush.msra.mxu0 %v567
        %682 = vmatpush.msra.mxu0 %v563
        %683 = vmatpush.msra.mxu0 %v559
        %684 = vmatpush.msra.mxu0 %v555
        %685 = vmatpush.msra.mxu0 %v551
        %686 = vmatpush.msra.mxu0 %v547
        %687 = vmatmul.f32.gmra.mxu0 %v353
        %v688 = vpop.f32.mrf.mxu0
        %v689 = vadd.f32 %v669, %v688
        %690 = vdwg.mxu0
        %691 = vmatpush.msra.mxu0 %v416
        %692 = vmatpush.msra.mxu0 %v412
        %693 = vmatpush.msra.mxu0 %v408
        %694 = vmatpush.msra.mxu0 %v404
        %695 = vmatpush.msra.mxu0 %v400
        %696 = vmatpush.msra.mxu0 %v396
        %697 = vmatpush.msra.mxu0 %v392
        %698 = vmatpush.msra.mxu0 %v388
        %699 = vmatpush.msra.mxu0 %v384
        %700 = vmatpush.msra.mxu0 %v380
        %701 = vmatpush.msra.mxu0 %v376
        %702 = vmatpush.msra.mxu0 %v372
        %703 = vmatpush.msra.mxu0 %v368
        %704 = vmatpush.msra.mxu0 %v364
        %705 = vmatpush.msra.mxu0 %v360
        %706 = vmatpush.msra.mxu0 %v356
        %707 = vmatmul.f32.gmra.mxu0 %v293
        %v708 = vpop.f32.mrf.mxu0
        %v709 = vadd.f32 0.0, %v708
        %710 = vdwg.mxu0
        %711 = vmatpush.msra.mxu0 %v480
        %712 = vmatpush.msra.mxu0 %v476
        %713 = vmatpush.msra.mxu0 %v472
        %714 = vmatpush.msra.mxu0 %v468
        %715 = vmatpush.msra.mxu0 %v464
        %716 = vmatpush.msra.mxu0 %v460
        %717 = vmatpush.msra.mxu0 %v456
        %718 = vmatpush.msra.mxu0 %v452
        %719 = vmatpush.msra.mxu0 %v448
        %720 = vmatpush.msra.mxu0 %v444
        %721 = vmatpush.msra.mxu0 %v440
        %722 = vmatpush.msra.mxu0 %v436
        %723 = vmatpush.msra.mxu0 %v432
        %724 = vmatpush.msra.mxu0 %v428
        %725 = vmatpush.msra.mxu0 %v424
        %726 = vmatpush.msra.mxu0 %v420
        %727 = vmatmul.f32.gmra.mxu0 %v313
        %v728 = vpop.f32.mrf.mxu0
        %v729 = vadd.f32 %v709, %v728
        %730 = vdwg.mxu0
        %731 = vmatpush.msra.mxu0 %v544
        %732 = vmatpush.msra.mxu0 %v540
        %733 = vmatpush.msra.mxu0 %v536
        %734 = vmatpush.msra.mxu0 %v532
        %735 = vmatpush.msra.mxu0 %v528
        %736 = vmatpush.msra.mxu0 %v524
        %737 = vmatpush.msra.mxu0 %v520
        %738 = vmatpush.msra.mxu0 %v516
        %739 = vmatpush.msra.mxu0 %v512
        %740 = vmatpush.msra.mxu0 %v508
        %741 = vmatpush.msra.mxu0 %v504
        %742 = vmatpush.msra.mxu0 %v500
        %743 = vmatpush.msra.mxu0 %v496
        %744 = vmatpush.msra.mxu0 %v492
        %745 = vmatpush.msra.mxu0 %v488
        %746 = vmatpush.msra.mxu0 %v484
        %747 = vmatmul.f32.gmra.mxu0 %v333
        %v748 = vpop.f32.mrf.mxu0
        %v749 = vadd.f32 %v729, %v748
        %750 = vdwg.mxu0
        %751 = vmatpush.msra.mxu0 %v608
        %752 = vmatpush.msra.mxu0 %v604
        %753 = vmatpush.msra.mxu0 %v600
        %754 = vmatpush.msra.mxu0 %v596
        %755 = vmatpush.msra.mxu0 %v592
        %756 = vmatpush.msra.mxu0 %v588
        %757 = vmatpush.msra.mxu0 %v584
        %758 = vmatpush.msra.mxu0 %v580
        %759 = vmatpush.msra.mxu0 %v576
        %760 = vmatpush.msra.mxu0 %v572
        %761 = vmatpush.msra.mxu0 %v568
        %762 = vmatpush.msra.mxu0 %v564
        %763 = vmatpush.msra.mxu0 %v560
        %764 = vmatpush.msra.mxu0 %v556
        %765 = vmatpush.msra.mxu0 %v552
        %766 = vmatpush.msra.mxu0 %v548
        %767 = vmatmul.f32.gmra.mxu0 %v353
        %v768 = vpop.f32.mrf.mxu0
        %v769 = vadd.f32 %v749, %v768
        %770 = vdwg.mxu0
        %771 = vmatpush.msra.mxu0 %v417
        %772 = vmatpush.msra.mxu0 %v413
        %773 = vmatpush.msra.mxu0 %v409
        %774 = vmatpush.msra.mxu0 %v405
        %775 = vmatpush.msra.mxu0 %v401
        %776 = vmatpush.msra.mxu0 %v397
        %777 = vmatpush.msra.mxu0 %v393
        %778 = vmatpush.msra.mxu0 %v389
        %779 = vmatpush.msra.mxu0 %v385
        %780 = vmatpush.msra.mxu0 %v381
        %781 = vmatpush.msra.mxu0 %v377
        %782 = vmatpush.msra.mxu0 %v373
        %783 = vmatpush.msra.mxu0 %v369
        %784 = vmatpush.msra.mxu0 %v365
        %785 = vmatpush.msra.mxu0 %v361
        %786 = vmatpush.msra.mxu0 %v357
        %787 = vmatmul.f32.gmra.mxu0 %v293
        %v788 = vpop.f32.mrf.mxu0
        %v789 = vadd.f32 0.0, %v788
        %790 = vdwg.mxu0
        %791 = vmatpush.msra.mxu0 %v481
        %792 = vmatpush.msra.mxu0 %v477
        %793 = vmatpush.msra.mxu0 %v473
        %794 = vmatpush.msra.mxu0 %v469
        %795 = vmatpush.msra.mxu0 %v465
        %796 = vmatpush.msra.mxu0 %v461
        %797 = vmatpush.msra.mxu0 %v457
        %798 = vmatpush.msra.mxu0 %v453
        %799 = vmatpush.msra.mxu0 %v449
        %800 = vmatpush.msra.mxu0 %v445
        %801 = vmatpush.msra.mxu0 %v441
        %802 = vmatpush.msra.mxu0 %v437
        %803 = vmatpush.msra.mxu0 %v433
        %804 = vmatpush.msra.mxu0 %v429
        %805 = vmatpush.msra.mxu0 %v425
        %806 = vmatpush.msra.mxu0 %v421
        %807 = vmatmul.f32.gmra.mxu0 %v313
        %v808 = vpop.f32.mrf.mxu0
        %v809 = vadd.f32 %v789, %v808
        %810 = vdwg.mxu0
        %811 = vmatpush.msra.mxu0 %v545
        %812 = vmatpush.msra.mxu0 %v541
        %813 = vmatpush.msra.mxu0 %v537
        %814 = vmatpush.msra.mxu0 %v533
        %815 = vmatpush.msra.mxu0 %v529
        %816 = vmatpush.msra.mxu0 %v525
        %817 = vmatpush.msra.mxu0 %v521
        %818 = vmatpush.msra.mxu0 %v517
        %819 = vmatpush.msra.mxu0 %v513
        %820 = vmatpush.msra.mxu0 %v509
        %821 = vmatpush.msra.mxu0 %v505
        %822 = vmatpush.msra.mxu0 %v501
        %823 = vmatpush.msra.mxu0 %v497
        %824 = vmatpush.msra.mxu0 %v493
        %825 = vmatpush.msra.mxu0 %v489
        %826 = vmatpush.msra.mxu0 %v485
        %827 = vmatmul.f32.gmra.mxu0 %v333
        %v828 = vpop.f32.mrf.mxu0
        %v829 = vadd.f32 %v809, %v828
        %830 = vdwg.mxu0
        %831 = vmatpush.msra.mxu0 %v609
        %832 = vmatpush.msra.mxu0 %v605
        %833 = vmatpush.msra.mxu0 %v601
        %834 = vmatpush.msra.mxu0 %v597
        %835 = vmatpush.msra.mxu0 %v593
        %836 = vmatpush.msra.mxu0 %v589
        %837 = vmatpush.msra.mxu0 %v585
        %838 = vmatpush.msra.mxu0 %v581
        %839 = vmatpush.msra.mxu0 %v577
        %840 = vmatpush.msra.mxu0 %v573
        %841 = vmatpush.msra.mxu0 %v569
        %842 = vmatpush.msra.mxu0 %v565
        %843 = vmatpush.msra.mxu0 %v561
        %844 = vmatpush.msra.mxu0 %v557
        %845 = vmatpush.msra.mxu0 %v553
        %846 = vmatpush.msra.mxu0 %v549
        %847 = vmatmul.f32.gmra.mxu0 %v353
        %v848 = vpop.f32.mrf.mxu0
        %v849 = vadd.f32 %v829, %v848
        %850 = vdwg.mxu0
        %851 = vmatpush.msra.mxu0 %v418
        %852 = vmatpush.msra.mxu0 %v414
        %853 = vmatpush.msra.mxu0 %v410
        %854 = vmatpush.msra.mxu0 %v406
        %855 = vmatpush.msra.mxu0 %v402
        %856 = vmatpush.msra.mxu0 %v398
        %857 = vmatpush.msra.mxu0 %v394
        %858 = vmatpush.msra.mxu0 %v390
        %859 = vmatpush.msra.mxu0 %v386
        %860 = vmatpush.msra.mxu0 %v382
        %861 = vmatpush.msra.mxu0 %v378
        %862 = vmatpush.msra.mxu0 %v374
        %863 = vmatpush.msra.mxu0 %v370
        %864 = vmatpush.msra.mxu0 %v366
        %865 = vmatpush.msra.mxu0 %v362
        %866 = vmatpush.msra.mxu0 %v358
        %867 = vmatmul.f32.gmra.mxu0 %v293
        %v868 = vpop.f32.mrf.mxu0
        %v869 = vadd.f32 0.0, %v868
        %870 = vdwg.mxu0
        %871 = vmatpush.msra.mxu0 %v482
        %872 = vmatpush.msra.mxu0 %v478
        %873 = vmatpush.msra.mxu0 %v474
        %874 = vmatpush.msra.mxu0 %v470
        %875 = vmatpush.msra.mxu0 %v466
        %876 = vmatpush.msra.mxu0 %v462
        %877 = vmatpush.msra.mxu0 %v458
        %878 = vmatpush.msra.mxu0 %v454
        %879 = vmatpush.msra.mxu0 %v450
        %880 = vmatpush.msra.mxu0 %v446
        %881 = vmatpush.msra.mxu0 %v442
        %882 = vmatpush.msra.mxu0 %v438
        %883 = vmatpush.msra.mxu0 %v434
        %884 = vmatpush.msra.mxu0 %v430
        %885 = vmatpush.msra.mxu0 %v426
        %886 = vmatpush.msra.mxu0 %v422
        %887 = vmatmul.f32.gmra.mxu0 %v313
        %v888 = vpop.f32.mrf.mxu0
        %v889 = vadd.f32 %v869, %v888
        %890 = vdwg.mxu0
        %891 = vmatpush.msra.mxu0 %v546
        %892 = vmatpush.msra.mxu0 %v542
        %893 = vmatpush.msra.mxu0 %v538
        %894 = vmatpush.msra.mxu0 %v534
        %895 = vmatpush.msra.mxu0 %v530
        %896 = vmatpush.msra.mxu0 %v526
        %897 = vmatpush.msra.mxu0 %v522
        %898 = vmatpush.msra.mxu0 %v518
        %899 = vmatpush.msra.mxu0 %v514
        %900 = vmatpush.msra.mxu0 %v510
        %901 = vmatpush.msra.mxu0 %v506
        %902 = vmatpush.msra.mxu0 %v502
        %903 = vmatpush.msra.mxu0 %v498
        %904 = vmatpush.msra.mxu0 %v494
        %905 = vmatpush.msra.mxu0 %v490
        %906 = vmatpush.msra.mxu0 %v486
        %907 = vmatmul.f32.gmra.mxu0 %v333
        %v908 = vpop.f32.mrf.mxu0
        %v909 = vadd.f32 %v889, %v908
        %910 = vdwg.mxu0
        %911 = vmatpush.msra.mxu0 %v610
        %912 = vmatpush.msra.mxu0 %v606
        %913 = vmatpush.msra.mxu0 %v602
        %914 = vmatpush.msra.mxu0 %v598
        %915 = vmatpush.msra.mxu0 %v594
        %916 = vmatpush.msra.mxu0 %v590
        %917 = vmatpush.msra.mxu0 %v586
        %918 = vmatpush.msra.mxu0 %v582
        %919 = vmatpush.msra.mxu0 %v578
        %920 = vmatpush.msra.mxu0 %v574
        %921 = vmatpush.msra.mxu0 %v570
        %922 = vmatpush.msra.mxu0 %v566
        %923 = vmatpush.msra.mxu0 %v562
        %924 = vmatpush.msra.mxu0 %v558
        %925 = vmatpush.msra.mxu0 %v554
        %926 = vmatpush.msra.mxu0 %v550
        %927 = vmatmul.f32.gmra.mxu0 %v353
        %v928 = vpop.f32.mrf.mxu0
        %v929 = vadd.f32 %v909, %v928
        %930 = vdwg.mxu0
        %v931 = vmul.f32 %v689, %v689
        %v932 = vmul.f32 %v769, %v769
        %v933 = vmul.f32 %v849, %v849
        %v934 = vmul.f32 %v929, %v929
        %v935 = vadd.f32 %v931, %v933
        %v936 = vadd.f32 %v932, %v934
        %937 = vst [vmem:[%s261] sm:$0xff] %v935
        %938 = vst [vmem:[%s261 + $0x8] sm:$0xff] %v936
        %s939 = sand.u32 %s120, 1
        %s940 = scalar_lea.sflag [#allocation4], %s939
        %s941 = sand.u32 %s120, 1
        %s942 = smul.addr %s941, 16
        %s943 = scalar_lea.vmem [#allocation10], %s942
        // Predicated region
        $region53: #{tpu_custom_call.1} parent=35 // pred_check
          %p944 = pneg %p130
        $region54: #{tpu_custom_call.1} parent=35 // pred_check_branch
          %946 = sbr.rel (%p944) target = $region56
        $region55: #{tpu_custom_call.1} parent=35 // pred_region
          %948 = vsyncadd %s940, 0
          %s949 = smul.addr %s23, 2
          %s950 = smul.addr %s949, 8
          %s951 = scalar_lea.hbm %s4, %s950
          %s953 = sshll.u32 %s943, 4
          %s954 = int_to_ptr.vmem [resolvable:$true] %s953
          %s955 = sshll.u32 %s951, 4
          %s956 = int_to_ptr.hbm [resolvable:$true] %s955
          %958 = dma.vmem_to_hbm [thread:$0]  %s954, 256, %s956, %s940
        $region56: #{tpu_custom_call.1} parent=35 // pred_fallthru
          _
      $region36: #{tpu_custom_call.1} parent=5 // pred_fallthru
        _
      %p959 = scmp.le.s32.totalorder 2, %s18
      // Predicated region
      $region57: #{tpu_custom_call.1} parent=5 // pred_check
        %p960 = pneg %p959
      $region58: #{tpu_custom_call.1} parent=5 // pred_check_branch
        %962 = sbr.rel (%p960) target = $region60
      $region59: #{tpu_custom_call.1} parent=5 // pred_region
        %s963 = ssub.s32 %s18, 2
        // Predicated region
        $region61: #{tpu_custom_call.1} parent=59 // pred_check
          %p964 = pneg %p136
        $region62: #{tpu_custom_call.1} parent=59 // pred_check_branch
          %966 = sbr.rel (%p964) target = $region64
        $region63: #{tpu_custom_call.1} parent=59 // pred_region
          %s967 = sand.u32 %s121, 1
          %s968 = scalar_lea.sflag [#allocation4], %s967
          %s969 = sand.u32 %s121, 1
          %s970 = smul.addr %s969, 16
          %s971 = scalar_lea.vmem [#allocation10], %s970
          %973 = dma.done %s968, 256
        $region64: #{tpu_custom_call.1} parent=59 // pred_fallthru
          _
      $region60: #{tpu_custom_call.1} parent=5 // pred_fallthru
        _
    $region6: #{tpu_custom_call.1} parent=1 // loop_footer
      %s22 = sadd.s32 1, %s18
    $region7: #{tpu_custom_call.1} parent=1 // loop_footer_branch
      %17 = sbr.rel target = $region3
    $region8: #{tpu_custom_call.1} parent=1 // loop_exit
      _
    %974 = vsyncpa [#allocation3], 1
    %s975 = scalar_lea.sflag [#allocation3], 1
    %976 = vsyncpa %s975, 1
    %977 = vsyncpa [#allocation6], 1
    %978 = vsyncpa [#allocation9], 1
    %979 = vsyncpa [#allocation4], 1
    %s980 = scalar_lea.sflag [#allocation4], 1
    %981 = vsyncpa %s980, 1

</llo_original>
